<compile_context>
chip_gen: v7x
topology: tpu7x:2x2x1
jax: 0.10.0
libtpu: 0.0.40
codegen_flags: <defaults>
</compile_context>

<pallas_src>
import jax
import jax.numpy as jnp
from jax.experimental import pallas as pl
from jax.experimental.pallas import tpu as pltpu


TILE_B = 128          # batch tile (multiple of 128; friendly to v5e MXU + sublanes)
LABEL_PAD = 128       # pad label_dim to a full lane width for dense stores


def post_mlp_kernel(x_ref, w1_ref, b1_ref, w2_ref, b2_ref, w3_ref, b3_ref, o_ref):
    """Fused 3-layer MLP on one (TILE_B, hidden) batch tile.

    Matmul operands are bf16 (MXU-native), accumulation is f32
    (preferred_element_type), bias-add and ReLU run in f32 on the VPU.
    """
    x = x_ref[...]                                   # bf16 (TILE_B, hidden)

    # linear1 + relu  (dropout1 is identity in eval mode)
    h1 = jnp.dot(x, w1_ref[...], preferred_element_type=jnp.float32) + b1_ref[...]
    h1 = jnp.maximum(h1, 0.0).astype(jnp.bfloat16)

    # linear2 + relu  (dropout2 is identity in eval mode)
    h2 = jnp.dot(h1, w2_ref[...], preferred_element_type=jnp.float32) + b2_ref[...]
    h2 = jnp.maximum(h2, 0.0).astype(jnp.bfloat16)

    # linear3 (no activation) — lane-padded output, dense stores
    out = jnp.dot(h2, w3_ref[...], preferred_element_type=jnp.float32) + b3_ref[...]
    o_ref[...] = out.astype(o_ref.dtype)


def post_mlp(x, params):
    """x: (B, hidden) float32 -> (B, label_dim) float32.

    params: (w1, b1, w2, b2, w3, b3) with
      w1, w2: (hidden, hidden) f32;  w3: (hidden, label_dim) f32
      b1, b2: (1, hidden) f32;       b3: (1, label_dim) f32
    """
    w1, b1, w2, b2, w3, b3 = params
    B, hidden = x.shape
    label_dim = w3.shape[1]

    # --- pad label dim up to a full lane width (zero columns) -------------
    label_pad = max(LABEL_PAD, ((label_dim + 127) // 128) * 128)
    w3p = jnp.zeros((hidden, label_pad), jnp.float32).at[:, :label_dim].set(w3)
    b3p = jnp.zeros((1, label_pad), jnp.float32).at[:, :label_dim].set(b3)

    # --- pad batch rows to a multiple of TILE_B (zero rows) ---------------
    B_pad = ((B + TILE_B - 1) // TILE_B) * TILE_B
    x_pad = jnp.zeros((B_pad, hidden), jnp.float32).at[:B, :].set(x)

    # --- bf16 matmul operands, f32 biases ----------------------------------
    x_bf = x_pad.astype(jnp.bfloat16)
    w1_bf = w1.astype(jnp.bfloat16)
    w2_bf = w2.astype(jnp.bfloat16)
    w3_bf = w3p.astype(jnp.bfloat16)

    n_tiles = B_pad // TILE_B

    out_pad = pl.pallas_call(
        post_mlp_kernel,
        out_shape=jax.ShapeDtypeStruct((B_pad, label_pad), jnp.float32),
        grid=(n_tiles,),
        in_specs=[
            pl.BlockSpec((TILE_B, hidden), lambda i: (i, 0)),      # x tile (streamed)
            pl.BlockSpec((hidden, hidden), lambda i: (0, 0)),      # w1 (resident)
            pl.BlockSpec((1, hidden), lambda i: (0, 0)),           # b1 (resident)
            pl.BlockSpec((hidden, hidden), lambda i: (0, 0)),      # w2 (resident)
            pl.BlockSpec((1, hidden), lambda i: (0, 0)),           # b2 (resident)
            pl.BlockSpec((hidden, label_pad), lambda i: (0, 0)),   # w3 (resident)
            pl.BlockSpec((1, label_pad), lambda i: (0, 0)),        # b3 (resident)
        ],
        out_specs=pl.BlockSpec((TILE_B, label_pad), lambda i: (i, 0)),
        compiler_params=pltpu.CompilerParams(
            dimension_semantics=("parallel",),   # shard batch tiles across TCs (v7x)
        ),
    )(x_bf, w1_bf, b1, w2_bf, b2, w3_bf, b3p)

    # slice away batch / lane padding
    return out_pad[:B, :label_dim]


def init_params(key, seq_len, embed_dim, label_dim):
    """Deterministic synthetic parameters matching nn.Linear shapes.

    PyTorch nn.Linear(in, out) has W: (out, in), b: (out,).
    We store W transposed as (in, out); biases as (1, out) for 2-D TPU layout.
    """
    hidden = embed_dim * seq_len
    keys = jax.random.split(key, 6)

    def linear_init(kw, kb, fan_in, fan_out):
        bound = 1.0 / jnp.sqrt(fan_in)
        w = jax.random.uniform(kw, (fan_in, fan_out), jnp.float32, -bound, bound)
        b = jax.random.uniform(kb, (1, fan_out), jnp.float32, -bound, bound)
        return w, b

    w1, b1 = linear_init(keys[0], keys[1], hidden, hidden)
    w2, b2 = linear_init(keys[2], keys[3], hidden, hidden)
    w3, b3 = linear_init(keys[4], keys[5], hidden, label_dim)
    return (w1, b1, w2, b2, w3, b3)


def post_mlp_ref(x, params):
    """Pure-JAX reference (eval-mode forward, bf16-rounded operands, f32 math)."""
    w1, b1, w2, b2, w3, b3 = params

    def bf(a):
        return a.astype(jnp.bfloat16).astype(jnp.float32)

    h = jnp.maximum(bf(x) @ bf(w1) + b1, 0.0)
    h = jnp.maximum(bf(h) @ bf(w2) + b2, 0.0)
    return bf(h) @ bf(w3) + b3


if __name__ == "__main__":
    # Small shapes consistent with the module: seq_len=8, embed_dim=32 -> hidden=256.
    seq_len, embed_dim, label_dim = 8, 32, 8
    batch = 2
    hidden = seq_len * embed_dim

    key = jax.random.PRNGKey(0)
    k_x, k_p = jax.random.split(key)

    x = jax.random.normal(k_x, (batch, hidden), dtype=jnp.float32)
    params = init_params(k_p, seq_len, embed_dim, label_dim)

    out = post_mlp(x, params)
    out = jax.block_until_ready(out)

    ref = post_mlp_ref(x, params)
    assert out.shape == (batch, label_dim), out.shape
    # bf16 matmul operands + f32 accumulation: compare with loosened tolerance.
    assert jnp.allclose(out, ref, atol=2e-2, rtol=2e-2), "mismatch vs reference"

    # TODO(synk): training-mode stochastic dropout (p=0.5) is not implemented;
    # this kernel reproduces the deterministic eval-mode forward pass.

    print("KERNEL_OK")
</pallas_src>

<mosaic_0001>
module attributes {stable_mosaic.version = 11 : i64} {
  func.func @post_mlp_kernel(%arg0: i32, %arg1: memref<128x256xbf16, #tpu.memory_space<vmem>>, %arg2: memref<256x256xbf16, #tpu.memory_space<vmem>>, %arg3: memref<1x256xf32, #tpu.memory_space<vmem>>, %arg4: memref<256x256xbf16, #tpu.memory_space<vmem>>, %arg5: memref<1x256xf32, #tpu.memory_space<vmem>>, %arg6: memref<256x128xbf16, #tpu.memory_space<vmem>>, %arg7: memref<1x128xf32, #tpu.memory_space<vmem>>, %arg8: memref<128x128xf32, #tpu.memory_space<vmem>>) attributes {dimension_semantics = [#tpu.dimension_semantics<parallel>], iteration_bounds = array<i64: 1>, scalar_prefetch = 0 : i64, scratch_operands = 0 : i64, tpu.core_type = #tpu.core_type<tc>, window_params = [{transform_indices = @transform_0, window_bounds = array<i64: 128, 256>}, {pipeline_mode = #tpu.pipeline_mode<synchronous>, transform_indices = @transform_1, window_bounds = array<i64: 256, 256>}, {pipeline_mode = #tpu.pipeline_mode<synchronous>, transform_indices = @transform_2, window_bounds = array<i64: 1, 256>}, {pipeline_mode = #tpu.pipeline_mode<synchronous>, transform_indices = @transform_3, window_bounds = array<i64: 256, 256>}, {pipeline_mode = #tpu.pipeline_mode<synchronous>, transform_indices = @transform_4, window_bounds = array<i64: 1, 256>}, {pipeline_mode = #tpu.pipeline_mode<synchronous>, transform_indices = @transform_5, window_bounds = array<i64: 256, 128>}, {pipeline_mode = #tpu.pipeline_mode<synchronous>, transform_indices = @transform_6, window_bounds = array<i64: 1, 128>}, {transform_indices = @transform_7, window_bounds = array<i64: 128, 128>}]} {
    %c0 = arith.constant 0 : index
    %c0_0 = arith.constant 0 : index
    %0 = vector.load %arg1[%c0, %c0_0] : memref<128x256xbf16, #tpu.memory_space<vmem>>, vector<128x256xbf16>
    %c0_1 = arith.constant 0 : index
    %c0_2 = arith.constant 0 : index
    %1 = vector.load %arg2[%c0_1, %c0_2] : memref<256x256xbf16, #tpu.memory_space<vmem>>, vector<256x256xbf16>
    %cst = arith.constant dense<0.000000e+00> : vector<128x256xf32>
    %2 = tpu.matmul %0, %1, %cst {dimension_numbers = #tpu.dot_dimension_numbers<[1], [0], [0], [1], [0, 0, 1, 1], [], []>} : vector<128x256xbf16>, vector<256x256xbf16>, vector<128x256xf32> -> vector<128x256xf32>
    %c0_3 = arith.constant 0 : index
    %c0_4 = arith.constant 0 : index
    %3 = vector.load %arg3[%c0_3, %c0_4] : memref<1x256xf32, #tpu.memory_space<vmem>>, vector<1x256xf32>
    %4 = vector.broadcast %3 : vector<1x256xf32> to vector<128x256xf32>
    %5 = arith.addf %2, %4 : vector<128x256xf32>
    %cst_5 = arith.constant 0.000000e+00 : f32
    %6 = vector.broadcast %cst_5 : f32 to vector<128x256xf32>
    %7 = arith.maximumf %5, %6 : vector<128x256xf32>
    %8 = arith.truncf %7 : vector<128x256xf32> to vector<128x256xbf16>
    %c0_6 = arith.constant 0 : index
    %c0_7 = arith.constant 0 : index
    %9 = vector.load %arg4[%c0_6, %c0_7] : memref<256x256xbf16, #tpu.memory_space<vmem>>, vector<256x256xbf16>
    %cst_8 = arith.constant dense<0.000000e+00> : vector<128x256xf32>
    %10 = tpu.matmul %8, %9, %cst_8 {dimension_numbers = #tpu.dot_dimension_numbers<[1], [0], [0], [1], [0, 0, 1, 1], [], []>} : vector<128x256xbf16>, vector<256x256xbf16>, vector<128x256xf32> -> vector<128x256xf32>
    %c0_9 = arith.constant 0 : index
    %c0_10 = arith.constant 0 : index
    %11 = vector.load %arg5[%c0_9, %c0_10] : memref<1x256xf32, #tpu.memory_space<vmem>>, vector<1x256xf32>
    %12 = vector.broadcast %11 : vector<1x256xf32> to vector<128x256xf32>
    %13 = arith.addf %10, %12 : vector<128x256xf32>
    %cst_11 = arith.constant 0.000000e+00 : f32
    %14 = vector.broadcast %cst_11 : f32 to vector<128x256xf32>
    %15 = arith.maximumf %13, %14 : vector<128x256xf32>
    %16 = arith.truncf %15 : vector<128x256xf32> to vector<128x256xbf16>
    %c0_12 = arith.constant 0 : index
    %c0_13 = arith.constant 0 : index
    %17 = vector.load %arg6[%c0_12, %c0_13] : memref<256x128xbf16, #tpu.memory_space<vmem>>, vector<256x128xbf16>
    %cst_14 = arith.constant dense<0.000000e+00> : vector<128x128xf32>
    %18 = tpu.matmul %16, %17, %cst_14 {dimension_numbers = #tpu.dot_dimension_numbers<[1], [0], [0], [1], [0, 0, 1, 1], [], []>} : vector<128x256xbf16>, vector<256x128xbf16>, vector<128x128xf32> -> vector<128x128xf32>
    %c0_15 = arith.constant 0 : index
    %c0_16 = arith.constant 0 : index
    %19 = vector.load %arg7[%c0_15, %c0_16] : memref<1x128xf32, #tpu.memory_space<vmem>>, vector<1x128xf32>
    %20 = vector.broadcast %19 : vector<1x128xf32> to vector<128x128xf32>
    %21 = arith.addf %18, %20 : vector<128x128xf32>
    %c0_17 = arith.constant 0 : index
    %c0_18 = arith.constant 0 : index
    %22 = vector.load %arg8[%c0_17, %c0_18] : memref<128x128xf32, #tpu.memory_space<vmem>>, vector<128x128xf32>
    tpu.vector_store %arg8[%c0_17, %c0_18], %21 {strides = array<i32>} : memref<128x128xf32, #tpu.memory_space<vmem>>, vector<128x128xf32>,
    return
  }
  func.func @transform_0(%arg0: i32) -> (i32, i32) {
    %c0_i32 = arith.constant 0 : i32
    %c0_i32_0 = arith.constant 0 : i32
    return %arg0, %c0_i32 : i32, i32
  }
  func.func @transform_1(%arg0: i32) -> (i32, i32) {
    %c0_i32 = arith.constant 0 : i32
    %c0_i32_0 = arith.constant 0 : i32
    %c0_i32_1 = arith.constant 0 : i32
    return %c0_i32, %c0_i32_0 : i32, i32
  }
  func.func @transform_2(%arg0: i32) -> (i32, i32) {
    %c0_i32 = arith.constant 0 : i32
    %c0_i32_0 = arith.constant 0 : i32
    %c0_i32_1 = arith.constant 0 : i32
    return %c0_i32, %c0_i32_0 : i32, i32
  }
  func.func @transform_3(%arg0: i32) -> (i32, i32) {
    %c0_i32 = arith.constant 0 : i32
    %c0_i32_0 = arith.constant 0 : i32
    %c0_i32_1 = arith.constant 0 : i32
    return %c0_i32, %c0_i32_0 : i32, i32
  }
  func.func @transform_4(%arg0: i32) -> (i32, i32) {
    %c0_i32 = arith.constant 0 : i32
    %c0_i32_0 = arith.constant 0 : i32
    %c0_i32_1 = arith.constant 0 : i32
    return %c0_i32, %c0_i32_0 : i32, i32
  }
  func.func @transform_5(%arg0: i32) -> (i32, i32) {
    %c0_i32 = arith.constant 0 : i32
    %c0_i32_0 = arith.constant 0 : i32
    %c0_i32_1 = arith.constant 0 : i32
    return %c0_i32, %c0_i32_0 : i32, i32
  }
  func.func @transform_6(%arg0: i32) -> (i32, i32) {
    %c0_i32 = arith.constant 0 : i32
    %c0_i32_0 = arith.constant 0 : i32
    %c0_i32_1 = arith.constant 0 : i32
    return %c0_i32, %c0_i32_0 : i32, i32
  }
  func.func @transform_7(%arg0: i32) -> (i32, i32) {
    %c0_i32 = arith.constant 0 : i32
    %c0_i32_0 = arith.constant 0 : i32
    return %arg0, %c0_i32 : i32, i32
  }
}

</mosaic_0001>

<llo_original>
// kernel: tpu_custom_call.1
$region0: #{tpu_custom_call.1}
  #allocation0 [shape = 'u32[]', space=smem, size = 0x4, offset = 0x4, fixed_abs, tag = 'smem constant byte address 0x4 - core index']
  #allocation1 [shape = 'u32[144,128]{1,0:T(1,128)}', space=vmem, size = 0x12000, scoped, tag = 'internal scratch']
  %s0 = inlined_call_operand.hbm [shape: bf16[128,256], index: 0, kind: input, shape index: {}]
  %s1 = inlined_call_operand.hbm [shape: bf16[256,256], index: 1, kind: input, shape index: {}]
  %s2 = inlined_call_operand.vmem [shape: f32[1,256], index: 2, kind: input, shape index: {}]
  %s3 = inlined_call_operand.hbm [shape: bf16[256,256], index: 3, kind: input, shape index: {}]
  %s4 = inlined_call_operand.vmem [shape: f32[1,256], index: 4, kind: input, shape index: {}]
  %s5 = inlined_call_operand.hbm [shape: bf16[256,128], index: 5, kind: input, shape index: {}]
  %s6 = inlined_call_operand.vmem [shape: f32[1,128], index: 6, kind: input, shape index: {}]
  %s7 = inlined_call_operand.hbm [shape: f32[128,128], index: 7, kind: output, shape index: {}]
  %s8 = sld [smem:[#allocation0]]
  $region54: #{tpu_custom_call.1} parent=0
    _
  %s10 = ssub.s32 1, %s8
  %s11 = scalar_select 0, %s10, %s8
  $region1: #{tpu_custom_call.1} parent=0
    #allocation2 [shape = 'u8[65536]{0}', space=vmem, size = 0x10000, scoped, tag = 'input window, operand 0, single buffered']
    #allocation3 [shape = 's32[1]{0}', space=sflag, size = 0x4, scoped, tag = 'scoped memory for tpu_custom_call.1']
    #allocation4 [shape = 's32[1]{0}', space=sflag, size = 0x4, scoped, tag = 'scoped memory for tpu_custom_call.1']
    #allocation5 [shape = 'u8[131072]{0}', space=vmem, size = 0x20000, scoped, tag = 'input window, operand 1, single buffered']
    #allocation6 [shape = 's32[1]{0}', space=sflag, size = 0x4, scoped, tag = 'scoped memory for tpu_custom_call.1']
    #allocation7 [shape = 'u8[131072]{0}', space=vmem, size = 0x20000, scoped, tag = 'input window, operand 3, single buffered']
    #allocation8 [shape = 'u8[65536]{0}', space=vmem, size = 0x10000, scoped, tag = 'input window, operand 5, single buffered']
    #allocation9 [shape = 's32[1]{0}', space=sflag, size = 0x4, scoped, tag = 'scoped memory for tpu_custom_call.1']
    #allocation10 [shape = 'u8[65536]{0}', space=vmem, size = 0x10000, scoped, tag = 'output window, operand 0, single buffered']
    %12 = vsyncpa [#allocation3], 0
    %13 = vsyncpa [#allocation6], 0
    %14 = vsyncpa [#allocation9], 0
    %15 = vsyncpa [#allocation4], 0
    // Predicated region
    $region2: #{tpu_custom_call.1} parent=1 // pred_check
      _
    $region3: #{tpu_custom_call.1} parent=1 // pred_check_branch
      %17 = sbr.rel (0) target = $region5
    $region4: #{tpu_custom_call.1} parent=1 // pred_region
      %s19 = ssub.s32 2048, 2048
      %20 = vsyncadd [#allocation3], %s19
      %s21 = sshll.u32 [#allocation2], 4
      %s22 = int_to_ptr.vmem [resolvable:$true] %s21
      %27 = dma.hbm_to_vmem [thread:$0]  %s0, 2048, %s22, [#allocation3], 128, 128, 8
    $region5: #{tpu_custom_call.1} parent=1 // pred_fallthru
      _
    // Predicated region
    $region6: #{tpu_custom_call.1} parent=1 // pred_check
      _
    $region7: #{tpu_custom_call.1} parent=1 // pred_check_branch
      %29 = sbr.rel (0) target = $region9
    $region8: #{tpu_custom_call.1} parent=1 // pred_region
      %s31 = ssub.s32 4096, 4096
      %32 = vsyncadd [#allocation6], %s31
      %s33 = sshll.u32 [#allocation5], 4
      %s34 = int_to_ptr.vmem [resolvable:$true] %s33
      %39 = dma.hbm_to_vmem [thread:$0]  %s1, 4096, %s34, [#allocation6], 128, 128, 8
    $region9: #{tpu_custom_call.1} parent=1 // pred_fallthru
      _
    // Predicated region
    $region10: #{tpu_custom_call.1} parent=1 // pred_check
      _
    $region11: #{tpu_custom_call.1} parent=1 // pred_check_branch
      %41 = sbr.rel (0) target = $region13
    $region12: #{tpu_custom_call.1} parent=1 // pred_region
      _
    $region13: #{tpu_custom_call.1} parent=1 // pred_fallthru
      _
    // Predicated region
    $region14: #{tpu_custom_call.1} parent=1 // pred_check
      _
    $region15: #{tpu_custom_call.1} parent=1 // pred_check_branch
      %43 = sbr.rel (0) target = $region17
    $region16: #{tpu_custom_call.1} parent=1 // pred_region
      %s45 = ssub.s32 4096, 4096
      %46 = vsyncadd [#allocation6], %s45
      %s47 = sshll.u32 [#allocation7], 4
      %s48 = int_to_ptr.vmem [resolvable:$true] %s47
      %53 = dma.hbm_to_vmem [thread:$0]  %s3, 4096, %s48, [#allocation6], 128, 128, 8
    $region17: #{tpu_custom_call.1} parent=1 // pred_fallthru
      _
    // Predicated region
    $region18: #{tpu_custom_call.1} parent=1 // pred_check
      _
    $region19: #{tpu_custom_call.1} parent=1 // pred_check_branch
      %55 = sbr.rel (0) target = $region21
    $region20: #{tpu_custom_call.1} parent=1 // pred_region
      _
    $region21: #{tpu_custom_call.1} parent=1 // pred_fallthru
      _
    // Predicated region
    $region22: #{tpu_custom_call.1} parent=1 // pred_check
      _
    $region23: #{tpu_custom_call.1} parent=1 // pred_check_branch
      %57 = sbr.rel (0) target = $region25
    $region24: #{tpu_custom_call.1} parent=1 // pred_region
      %s59 = ssub.s32 2048, 2048
      %60 = vsyncadd [#allocation9], %s59
      %s61 = sshll.u32 [#allocation8], 4
      %s62 = int_to_ptr.vmem [resolvable:$true] %s61
      %67 = dma.hbm_to_vmem [thread:$0]  %s5, 2048, %s62, [#allocation9], 64, 64, 4
    $region25: #{tpu_custom_call.1} parent=1 // pred_fallthru
      _
    // Predicated region
    $region26: #{tpu_custom_call.1} parent=1 // pred_check
      _
    $region27: #{tpu_custom_call.1} parent=1 // pred_check_branch
      %69 = sbr.rel (0) target = $region29
    $region28: #{tpu_custom_call.1} parent=1 // pred_region
      _
    $region29: #{tpu_custom_call.1} parent=1 // pred_fallthru
      _
    // Predicated region
    $region30: #{tpu_custom_call.1} parent=1 // pred_check
      _
    $region31: #{tpu_custom_call.1} parent=1 // pred_check_branch
      %71 = sbr.rel (0) target = $region33
    $region32: #{tpu_custom_call.1} parent=1 // pred_region
      %72 = dma.done [#allocation3], 2048
    $region33: #{tpu_custom_call.1} parent=1 // pred_fallthru
      _
    // Predicated region
    $region34: #{tpu_custom_call.1} parent=1 // pred_check
      _
    $region35: #{tpu_custom_call.1} parent=1 // pred_check_branch
      %74 = sbr.rel (0) target = $region37
    $region36: #{tpu_custom_call.1} parent=1 // pred_region
      %75 = dma.done [#allocation6], 4096
    $region37: #{tpu_custom_call.1} parent=1 // pred_fallthru
      _
    // Predicated region
    $region38: #{tpu_custom_call.1} parent=1 // pred_check
      _
    $region39: #{tpu_custom_call.1} parent=1 // pred_check_branch
      %77 = sbr.rel (0) target = $region41
    $region40: #{tpu_custom_call.1} parent=1 // pred_region
      %78 = dma.done [#allocation6], 4096
    $region41: #{tpu_custom_call.1} parent=1 // pred_fallthru
      _
    // Predicated region
    $region42: #{tpu_custom_call.1} parent=1 // pred_check
      _
    $region43: #{tpu_custom_call.1} parent=1 // pred_check_branch
      %80 = sbr.rel (0) target = $region45
    $region44: #{tpu_custom_call.1} parent=1 // pred_region
      %81 = dma.done [#allocation9], 2048
    $region45: #{tpu_custom_call.1} parent=1 // pred_fallthru
      _
    %v83 = vld [vmem:[#allocation2] sm:$0xff]
    %v84 = vld [vmem:[#allocation2 + $0x8] sm:$0xff]
    %v85 = vld [vmem:[#allocation2 + $0x10] sm:$0xff]
    %v86 = vld [vmem:[#allocation2 + $0x18] sm:$0xff]
    %v87 = vld [vmem:[#allocation2 + $0x20] sm:$0xff]
    %v88 = vld [vmem:[#allocation2 + $0x28] sm:$0xff]
    %v89 = vld [vmem:[#allocation2 + $0x30] sm:$0xff]
    %v90 = vld [vmem:[#allocation2 + $0x38] sm:$0xff]
    %v91 = vld [vmem:[#allocation2 + $0x40] sm:$0xff]
    %v92 = vld [vmem:[#allocation2 + $0x48] sm:$0xff]
    %v93 = vld [vmem:[#allocation2 + $0x50] sm:$0xff]
    %v94 = vld [vmem:[#allocation2 + $0x58] sm:$0xff]
    %v95 = vld [vmem:[#allocation2 + $0x60] sm:$0xff]
    %v96 = vld [vmem:[#allocation2 + $0x68] sm:$0xff]
    %v97 = vld [vmem:[#allocation2 + $0x70] sm:$0xff]
    %v98 = vld [vmem:[#allocation2 + $0x78] sm:$0xff]
    %v99 = vld [vmem:[#allocation5] sm:$0xff]
    %v100 = vld [vmem:[#allocation5 + $0x8] sm:$0xff]
    %v101 = vld [vmem:[#allocation5 + $0x10] sm:$0xff]
    %v102 = vld [vmem:[#allocation5 + $0x18] sm:$0xff]
    %v103 = vld [vmem:[#allocation5 + $0x20] sm:$0xff]
    %v104 = vld [vmem:[#allocation5 + $0x28] sm:$0xff]
    %v105 = vld [vmem:[#allocation5 + $0x30] sm:$0xff]
    %v106 = vld [vmem:[#allocation5 + $0x38] sm:$0xff]
    %v107 = vld [vmem:[#allocation5 + $0x40] sm:$0xff]
    %v108 = vld [vmem:[#allocation5 + $0x48] sm:$0xff]
    %v109 = vld [vmem:[#allocation5 + $0x50] sm:$0xff]
    %v110 = vld [vmem:[#allocation5 + $0x58] sm:$0xff]
    %v111 = vld [vmem:[#allocation5 + $0x60] sm:$0xff]
    %v112 = vld [vmem:[#allocation5 + $0x68] sm:$0xff]
    %v113 = vld [vmem:[#allocation5 + $0x70] sm:$0xff]
    %v114 = vld [vmem:[#allocation5 + $0x78] sm:$0xff]
    %v115 = vld [vmem:[#allocation5 + $0x80] sm:$0xff]
    %v116 = vld [vmem:[#allocation5 + $0x88] sm:$0xff]
    %v117 = vld [vmem:[#allocation5 + $0x90] sm:$0xff]
    %v118 = vld [vmem:[#allocation5 + $0x98] sm:$0xff]
    %v119 = vld [vmem:[#allocation5 + $0xa0] sm:$0xff]
    %v120 = vld [vmem:[#allocation5 + $0xa8] sm:$0xff]
    %v121 = vld [vmem:[#allocation5 + $0xb0] sm:$0xff]
    %v122 = vld [vmem:[#allocation5 + $0xb8] sm:$0xff]
    %v123 = vld [vmem:[#allocation5 + $0xc0] sm:$0xff]
    %v124 = vld [vmem:[#allocation5 + $0xc8] sm:$0xff]
    %v125 = vld [vmem:[#allocation5 + $0xd0] sm:$0xff]
    %v126 = vld [vmem:[#allocation5 + $0xd8] sm:$0xff]
    %v127 = vld [vmem:[#allocation5 + $0xe0] sm:$0xff]
    %v128 = vld [vmem:[#allocation5 + $0xe8] sm:$0xff]
    %v129 = vld [vmem:[#allocation5 + $0xf0] sm:$0xff]
    %v130 = vld [vmem:[#allocation5 + $0xf8] sm:$0xff]
    %v131 = vld [vmem:[%s2] sm:$0x3]
    %v133 = vlaneseq
    %v134 = vshrl.u32 %v133, 7
    %v135 = vsub.s32 0, %v134
    %v136 = vrot.slane %v131, %v135
    %v137 = vlaneseq
    %v138 = vshrl.u32 %v137, 7
    %v139 = vsub.s32 1, %v138
    %v140 = vrot.slane %v131, %v139
    %v159 = vunpack.c.l.b16 %v83
    %v160 = vunpack.c.h.b16 %v83
    %v161 = vunpack.c.l.b16 %v84
    %v162 = vunpack.c.h.b16 %v84
    %v163 = vunpack.c.l.b16 %v85
    %v164 = vunpack.c.h.b16 %v85
    %v165 = vunpack.c.l.b16 %v86
    %v166 = vunpack.c.h.b16 %v86
    %v167 = vunpack.c.l.b16 %v87
    %v168 = vunpack.c.h.b16 %v87
    %v169 = vunpack.c.l.b16 %v88
    %v170 = vunpack.c.h.b16 %v88
    %v171 = vunpack.c.l.b16 %v89
    %v172 = vunpack.c.h.b16 %v89
    %v173 = vunpack.c.l.b16 %v90
    %v174 = vunpack.c.h.b16 %v90
    %v175 = vunpack.c.l.b16 %v91
    %v176 = vunpack.c.h.b16 %v91
    %v177 = vunpack.c.l.b16 %v92
    %v178 = vunpack.c.h.b16 %v92
    %v179 = vunpack.c.l.b16 %v93
    %v180 = vunpack.c.h.b16 %v93
    %v181 = vunpack.c.l.b16 %v94
    %v182 = vunpack.c.h.b16 %v94
    %v183 = vunpack.c.l.b16 %v95
    %v184 = vunpack.c.h.b16 %v95
    %v185 = vunpack.c.l.b16 %v96
    %v186 = vunpack.c.h.b16 %v96
    %v187 = vunpack.c.l.b16 %v97
    %v188 = vunpack.c.h.b16 %v97
    %v189 = vunpack.c.l.b16 %v98
    %v190 = vunpack.c.h.b16 %v98
    %v191 = vpack.c.b16 %v161, %v159
    %v192 = vpack.c.b16 %v162, %v160
    %v193 = vpack.c.b16 %v165, %v163
    %v194 = vpack.c.b16 %v166, %v164
    %v195 = vpack.c.b16 %v169, %v167
    %v196 = vpack.c.b16 %v170, %v168
    %v197 = vpack.c.b16 %v173, %v171
    %v198 = vpack.c.b16 %v174, %v172
    %v199 = vpack.c.b16 %v177, %v175
    %v200 = vpack.c.b16 %v178, %v176
    %v201 = vpack.c.b16 %v181, %v179
    %v202 = vpack.c.b16 %v182, %v180
    %v203 = vpack.c.b16 %v185, %v183
    %v204 = vpack.c.b16 %v186, %v184
    %v205 = vpack.c.b16 %v189, %v187
    %v206 = vpack.c.b16 %v190, %v188
    %v255 = vunpack.c.l.b16 %v99
    %v256 = vunpack.c.h.b16 %v99
    %v257 = vunpack.c.l.b16 %v100
    %v258 = vunpack.c.h.b16 %v100
    %v259 = vunpack.c.l.b16 %v101
    %v260 = vunpack.c.h.b16 %v101
    %v261 = vunpack.c.l.b16 %v102
    %v262 = vunpack.c.h.b16 %v102
    %v263 = vunpack.c.l.b16 %v103
    %v264 = vunpack.c.h.b16 %v103
    %v265 = vunpack.c.l.b16 %v104
    %v266 = vunpack.c.h.b16 %v104
    %v267 = vunpack.c.l.b16 %v105
    %v268 = vunpack.c.h.b16 %v105
    %v269 = vunpack.c.l.b16 %v106
    %v270 = vunpack.c.h.b16 %v106
    %v271 = vunpack.c.l.b16 %v107
    %v272 = vunpack.c.h.b16 %v107
    %v273 = vunpack.c.l.b16 %v108
    %v274 = vunpack.c.h.b16 %v108
    %v275 = vunpack.c.l.b16 %v109
    %v276 = vunpack.c.h.b16 %v109
    %v277 = vunpack.c.l.b16 %v110
    %v278 = vunpack.c.h.b16 %v110
    %v279 = vunpack.c.l.b16 %v111
    %v280 = vunpack.c.h.b16 %v111
    %v281 = vunpack.c.l.b16 %v112
    %v282 = vunpack.c.h.b16 %v112
    %v283 = vunpack.c.l.b16 %v113
    %v284 = vunpack.c.h.b16 %v113
    %v285 = vunpack.c.l.b16 %v114
    %v286 = vunpack.c.h.b16 %v114
    %v287 = vunpack.c.l.b16 %v115
    %v288 = vunpack.c.h.b16 %v115
    %v289 = vunpack.c.l.b16 %v116
    %v290 = vunpack.c.h.b16 %v116
    %v291 = vunpack.c.l.b16 %v117
    %v292 = vunpack.c.h.b16 %v117
    %v293 = vunpack.c.l.b16 %v118
    %v294 = vunpack.c.h.b16 %v118
    %v295 = vunpack.c.l.b16 %v119
    %v296 = vunpack.c.h.b16 %v119
    %v297 = vunpack.c.l.b16 %v120
    %v298 = vunpack.c.h.b16 %v120
    %v299 = vunpack.c.l.b16 %v121
    %v300 = vunpack.c.h.b16 %v121
    %v301 = vunpack.c.l.b16 %v122
    %v302 = vunpack.c.h.b16 %v122
    %v303 = vunpack.c.l.b16 %v123
    %v304 = vunpack.c.h.b16 %v123
    %v305 = vunpack.c.l.b16 %v124
    %v306 = vunpack.c.h.b16 %v124
    %v307 = vunpack.c.l.b16 %v125
    %v308 = vunpack.c.h.b16 %v125
    %v309 = vunpack.c.l.b16 %v126
    %v310 = vunpack.c.h.b16 %v126
    %v311 = vunpack.c.l.b16 %v127
    %v312 = vunpack.c.h.b16 %v127
    %v313 = vunpack.c.l.b16 %v128
    %v314 = vunpack.c.h.b16 %v128
    %v315 = vunpack.c.l.b16 %v129
    %v316 = vunpack.c.h.b16 %v129
    %v317 = vunpack.c.l.b16 %v130
    %v318 = vunpack.c.h.b16 %v130
    %v319 = vpack.c.b16 %v257, %v255
    %v320 = vpack.c.b16 %v258, %v256
    %v321 = vpack.c.b16 %v261, %v259
    %v322 = vpack.c.b16 %v262, %v260
    %v323 = vpack.c.b16 %v265, %v263
    %v324 = vpack.c.b16 %v266, %v264
    %v325 = vpack.c.b16 %v269, %v267
    %v326 = vpack.c.b16 %v270, %v268
    %v327 = vpack.c.b16 %v273, %v271
    %v328 = vpack.c.b16 %v274, %v272
    %v329 = vpack.c.b16 %v277, %v275
    %v330 = vpack.c.b16 %v278, %v276
    %v331 = vpack.c.b16 %v281, %v279
    %v332 = vpack.c.b16 %v282, %v280
    %v333 = vpack.c.b16 %v285, %v283
    %v334 = vpack.c.b16 %v286, %v284
    %v335 = vpack.c.b16 %v289, %v287
    %v336 = vpack.c.b16 %v290, %v288
    %v337 = vpack.c.b16 %v293, %v291
    %v338 = vpack.c.b16 %v294, %v292
    %v339 = vpack.c.b16 %v297, %v295
    %v340 = vpack.c.b16 %v298, %v296
    %v341 = vpack.c.b16 %v301, %v299
    %v342 = vpack.c.b16 %v302, %v300
    %v343 = vpack.c.b16 %v305, %v303
    %v344 = vpack.c.b16 %v306, %v304
    %v345 = vpack.c.b16 %v309, %v307
    %v346 = vpack.c.b16 %v310, %v308
    %v347 = vpack.c.b16 %v313, %v311
    %v348 = vpack.c.b16 %v314, %v312
    %v349 = vpack.c.b16 %v317, %v315
    %v350 = vpack.c.b16 %v318, %v316
    %383 = vmatprep.subr.bf16.mxu0 %v320
    %384 = vmatpush1.bf16.msra.mxu0 %v319
    %385 = vmatprep.subr.bf16.mxu0 %v322
    %386 = vmatpush1.bf16.msra.mxu0 %v321
    %387 = vmatprep.subr.bf16.mxu0 %v324
    %388 = vmatpush1.bf16.msra.mxu0 %v323
    %389 = vmatprep.subr.bf16.mxu0 %v326
    %390 = vmatpush1.bf16.msra.mxu0 %v325
    %391 = vmatprep.subr.bf16.mxu0 %v328
    %392 = vmatpush1.bf16.msra.mxu0 %v327
    %393 = vmatprep.subr.bf16.mxu0 %v330
    %394 = vmatpush1.bf16.msra.mxu0 %v329
    %395 = vmatprep.subr.bf16.mxu0 %v332
    %396 = vmatpush1.bf16.msra.mxu0 %v331
    %397 = vmatprep.subr.bf16.mxu0 %v334
    %398 = vmatpush1.bf16.msra.mxu0 %v333
    %399 = vmatprep.subr.bf16.mxu0 %v336
    %400 = vmatpush1.bf16.msra.mxu0 %v335
    %401 = vmatprep.subr.bf16.mxu0 %v338
    %402 = vmatpush1.bf16.msra.mxu0 %v337
    %403 = vmatprep.subr.bf16.mxu0 %v340
    %404 = vmatpush1.bf16.msra.mxu0 %v339
    %405 = vmatprep.subr.bf16.mxu0 %v342
    %406 = vmatpush1.bf16.msra.mxu0 %v341
    %407 = vmatprep.subr.bf16.mxu0 %v344
    %408 = vmatpush1.bf16.msra.mxu0 %v343
    %409 = vmatprep.subr.bf16.mxu0 %v346
    %410 = vmatpush1.bf16.msra.mxu0 %v345
    %411 = vmatprep.subr.bf16.mxu0 %v348
    %412 = vmatpush1.bf16.msra.mxu0 %v347
    %413 = vmatprep.subr.bf16.mxu0 %v350
    %414 = vmatpush1.bf16.msra.mxu0 %v349
    %415 = vmatprep.mubr.bf16.mxu0 %v192
    %416 = vmatmul.mubr.bf16.gmra.mrb[0].mxu0 %v191
    %v417 = vpop.f32.mrb[0].mxu0
    %v418 = vadd.f32 %v136, %v417
    %v419 = vpop.f32.mrb[0].mxu0
    %v420 = vadd.f32 %v140, %v419
    %v421 = vpop.f32.mrb[0].mxu0
    %v422 = vadd.f32 %v136, %v421
    %v423 = vpop.f32.mrb[0].mxu0
    %v424 = vadd.f32 %v140, %v423
    %425 = vmatprep.mubr.bf16.mxu0 %v194
    %426 = vmatmul.mubr.bf16.gmra.mrb[0].mxu0 %v193
    %v427 = vpop.f32.mrb[0].mxu0
    %v428 = vadd.f32 %v136, %v427
    %v429 = vpop.f32.mrb[0].mxu0
    %v430 = vadd.f32 %v140, %v429
    %v431 = vpop.f32.mrb[0].mxu0
    %v432 = vadd.f32 %v136, %v431
    %v433 = vpop.f32.mrb[0].mxu0
    %v434 = vadd.f32 %v140, %v433
    %435 = vmatprep.mubr.bf16.mxu0 %v196
    %436 = vmatmul.mubr.bf16.gmra.mrb[0].mxu0 %v195
    %v437 = vpop.f32.mrb[0].mxu0
    %v438 = vadd.f32 %v136, %v437
    %v439 = vpop.f32.mrb[0].mxu0
    %v440 = vadd.f32 %v140, %v439
    %v441 = vpop.f32.mrb[0].mxu0
    %v442 = vadd.f32 %v136, %v441
    %v443 = vpop.f32.mrb[0].mxu0
    %v444 = vadd.f32 %v140, %v443
    %445 = vmatprep.mubr.bf16.mxu0 %v198
    %446 = vmatmul.mubr.bf16.gmra.mrb[0].mxu0 %v197
    %v447 = vpop.f32.mrb[0].mxu0
    %v448 = vadd.f32 %v136, %v447
    %v449 = vpop.f32.mrb[0].mxu0
    %v450 = vadd.f32 %v140, %v449
    %v451 = vpop.f32.mrb[0].mxu0
    %v452 = vadd.f32 %v136, %v451
    %v453 = vpop.f32.mrb[0].mxu0
    %v454 = vadd.f32 %v140, %v453
    %455 = vmatprep.mubr.bf16.mxu0 %v200
    %456 = vmatmul.mubr.bf16.gmra.mrb[0].mxu0 %v199
    %v457 = vpop.f32.mrb[0].mxu0
    %v458 = vadd.f32 %v136, %v457
    %v459 = vpop.f32.mrb[0].mxu0
    %v460 = vadd.f32 %v140, %v459
    %v461 = vpop.f32.mrb[0].mxu0
    %v462 = vadd.f32 %v136, %v461
    %v463 = vpop.f32.mrb[0].mxu0
    %v464 = vadd.f32 %v140, %v463
    %465 = vmatprep.mubr.bf16.mxu0 %v202
    %466 = vmatmul.mubr.bf16.gmra.mrb[0].mxu0 %v201
    %v467 = vpop.f32.mrb[0].mxu0
    %v468 = vadd.f32 %v136, %v467
    %v469 = vpop.f32.mrb[0].mxu0
    %v470 = vadd.f32 %v140, %v469
    %v471 = vpop.f32.mrb[0].mxu0
    %v472 = vadd.f32 %v136, %v471
    %v473 = vpop.f32.mrb[0].mxu0
    %v474 = vadd.f32 %v140, %v473
    %475 = vmatprep.mubr.bf16.mxu0 %v204
    %476 = vmatmul.mubr.bf16.gmra.mrb[0].mxu0 %v203
    %v477 = vpop.f32.mrb[0].mxu0
    %v478 = vadd.f32 %v136, %v477
    %v479 = vpop.f32.mrb[0].mxu0
    %v480 = vadd.f32 %v140, %v479
    %v481 = vpop.f32.mrb[0].mxu0
    %v482 = vadd.f32 %v136, %v481
    %v483 = vpop.f32.mrb[0].mxu0
    %v484 = vadd.f32 %v140, %v483
    %485 = vmatprep.mubr.bf16.mxu0 %v206
    %486 = vmatmul.mubr.bf16.gmra.mrb[0].mxu0 %v205
    %v487 = vpop.f32.mrb[0].mxu0
    %v488 = vadd.f32 %v136, %v487
    %v489 = vpop.f32.mrb[0].mxu0
    %v490 = vadd.f32 %v140, %v489
    %v491 = vpop.f32.mrb[0].mxu0
    %v492 = vadd.f32 %v136, %v491
    %v493 = vpop.f32.mrb[0].mxu0
    %v494 = vadd.f32 %v140, %v493
    %495 = vdwg.mxu0
    %v496 = vmax.f32 %v418, 0.0
    %v497 = vmax.f32 %v420, 0.0
    %v498 = vmax.f32 %v422, 0.0
    %v499 = vmax.f32 %v424, 0.0
    %v500 = vmax.f32 %v428, 0.0
    %v501 = vmax.f32 %v430, 0.0
    %v502 = vmax.f32 %v432, 0.0
    %v503 = vmax.f32 %v434, 0.0
    %v504 = vmax.f32 %v438, 0.0
    %v505 = vmax.f32 %v440, 0.0
    %v506 = vmax.f32 %v442, 0.0
    %v507 = vmax.f32 %v444, 0.0
    %v508 = vmax.f32 %v448, 0.0
    %v509 = vmax.f32 %v450, 0.0
    %v510 = vmax.f32 %v452, 0.0
    %v511 = vmax.f32 %v454, 0.0
    %v512 = vmax.f32 %v458, 0.0
    %v513 = vmax.f32 %v460, 0.0
    %v514 = vmax.f32 %v462, 0.0
    %v515 = vmax.f32 %v464, 0.0
    %v516 = vmax.f32 %v468, 0.0
    %v517 = vmax.f32 %v470, 0.0
    %v518 = vmax.f32 %v472, 0.0
    %v519 = vmax.f32 %v474, 0.0
    %v520 = vmax.f32 %v478, 0.0
    %v521 = vmax.f32 %v480, 0.0
    %v522 = vmax.f32 %v482, 0.0
    %v523 = vmax.f32 %v484, 0.0
    %v524 = vmax.f32 %v488, 0.0
    %v525 = vmax.f32 %v490, 0.0
    %v526 = vmax.f32 %v492, 0.0
    %v527 = vmax.f32 %v494, 0.0
    %v528 = vpack.c.bf16 %v498, %v496
    %v529 = vpack.c.bf16 %v499, %v497
    %v530 = vpack.c.bf16 %v502, %v500
    %v531 = vpack.c.bf16 %v503, %v501
    %v532 = vpack.c.bf16 %v506, %v504
    %v533 = vpack.c.bf16 %v507, %v505
    %v534 = vpack.c.bf16 %v510, %v508
    %v535 = vpack.c.bf16 %v511, %v509
    %v536 = vpack.c.bf16 %v514, %v512
    %v537 = vpack.c.bf16 %v515, %v513
    %v538 = vpack.c.bf16 %v518, %v516
    %v539 = vpack.c.bf16 %v519, %v517
    %v540 = vpack.c.bf16 %v522, %v520
    %v541 = vpack.c.bf16 %v523, %v521
    %v542 = vpack.c.bf16 %v526, %v524
    %v543 = vpack.c.bf16 %v527, %v525
    %v544 = vld [vmem:[#allocation7] sm:$0xff]
    %v545 = vld [vmem:[#allocation7 + $0x8] sm:$0xff]
    %v546 = vld [vmem:[#allocation7 + $0x10] sm:$0xff]
    %v547 = vld [vmem:[#allocation7 + $0x18] sm:$0xff]
    %v548 = vld [vmem:[#allocation7 + $0x20] sm:$0xff]
    %v549 = vld [vmem:[#allocation7 + $0x28] sm:$0xff]
    %v550 = vld [vmem:[#allocation7 + $0x30] sm:$0xff]
    %v551 = vld [vmem:[#allocation7 + $0x38] sm:$0xff]
    %v552 = vld [vmem:[#allocation7 + $0x40] sm:$0xff]
    %v553 = vld [vmem:[#allocation7 + $0x48] sm:$0xff]
    %v554 = vld [vmem:[#allocation7 + $0x50] sm:$0xff]
    %v555 = vld [vmem:[#allocation7 + $0x58] sm:$0xff]
    %v556 = vld [vmem:[#allocation7 + $0x60] sm:$0xff]
    %v557 = vld [vmem:[#allocation7 + $0x68] sm:$0xff]
    %v558 = vld [vmem:[#allocation7 + $0x70] sm:$0xff]
    %v559 = vld [vmem:[#allocation7 + $0x78] sm:$0xff]
    %v560 = vld [vmem:[#allocation7 + $0x80] sm:$0xff]
    %v561 = vld [vmem:[#allocation7 + $0x88] sm:$0xff]
    %v562 = vld [vmem:[#allocation7 + $0x90] sm:$0xff]
    %v563 = vld [vmem:[#allocation7 + $0x98] sm:$0xff]
    %v564 = vld [vmem:[#allocation7 + $0xa0] sm:$0xff]
    %v565 = vld [vmem:[#allocation7 + $0xa8] sm:$0xff]
    %v566 = vld [vmem:[#allocation7 + $0xb0] sm:$0xff]
    %v567 = vld [vmem:[#allocation7 + $0xb8] sm:$0xff]
    %v568 = vld [vmem:[#allocation7 + $0xc0] sm:$0xff]
    %v569 = vld [vmem:[#allocation7 + $0xc8] sm:$0xff]
    %v570 = vld [vmem:[#allocation7 + $0xd0] sm:$0xff]
    %v571 = vld [vmem:[#allocation7 + $0xd8] sm:$0xff]
    %v572 = vld [vmem:[#allocation7 + $0xe0] sm:$0xff]
    %v573 = vld [vmem:[#allocation7 + $0xe8] sm:$0xff]
    %v574 = vld [vmem:[#allocation7 + $0xf0] sm:$0xff]
    %v575 = vld [vmem:[#allocation7 + $0xf8] sm:$0xff]
    %v576 = vld [vmem:[%s4] sm:$0x3]
    %v578 = vlaneseq
    %v579 = vshrl.u32 %v578, 7
    %v580 = vsub.s32 0, %v579
    %v581 = vrot.slane %v576, %v580
    %v582 = vlaneseq
    %v583 = vshrl.u32 %v582, 7
    %v584 = vsub.s32 1, %v583
    %v585 = vrot.slane %v576, %v584
    %v620 = vunpack.c.l.b16 %v544
    %v621 = vunpack.c.h.b16 %v544
    %v622 = vunpack.c.l.b16 %v545
    %v623 = vunpack.c.h.b16 %v545
    %v624 = vunpack.c.l.b16 %v546
    %v625 = vunpack.c.h.b16 %v546
    %v626 = vunpack.c.l.b16 %v547
    %v627 = vunpack.c.h.b16 %v547
    %v628 = vunpack.c.l.b16 %v548
    %v629 = vunpack.c.h.b16 %v548
    %v630 = vunpack.c.l.b16 %v549
    %v631 = vunpack.c.h.b16 %v549
    %v632 = vunpack.c.l.b16 %v550
    %v633 = vunpack.c.h.b16 %v550
    %v634 = vunpack.c.l.b16 %v551
    %v635 = vunpack.c.h.b16 %v551
    %v636 = vunpack.c.l.b16 %v552
    %v637 = vunpack.c.h.b16 %v552
    %v638 = vunpack.c.l.b16 %v553
    %v639 = vunpack.c.h.b16 %v553
    %v640 = vunpack.c.l.b16 %v554
    %v641 = vunpack.c.h.b16 %v554
    %v642 = vunpack.c.l.b16 %v555
    %v643 = vunpack.c.h.b16 %v555
    %v644 = vunpack.c.l.b16 %v556
    %v645 = vunpack.c.h.b16 %v556
    %v646 = vunpack.c.l.b16 %v557
    %v647 = vunpack.c.h.b16 %v557
    %v648 = vunpack.c.l.b16 %v558
    %v649 = vunpack.c.h.b16 %v558
    %v650 = vunpack.c.l.b16 %v559
    %v651 = vunpack.c.h.b16 %v559
    %v652 = vunpack.c.l.b16 %v560
    %v653 = vunpack.c.h.b16 %v560
    %v654 = vunpack.c.l.b16 %v561
    %v655 = vunpack.c.h.b16 %v561
    %v656 = vunpack.c.l.b16 %v562
    %v657 = vunpack.c.h.b16 %v562
    %v658 = vunpack.c.l.b16 %v563
    %v659 = vunpack.c.h.b16 %v563
    %v660 = vunpack.c.l.b16 %v564
    %v661 = vunpack.c.h.b16 %v564
    %v662 = vunpack.c.l.b16 %v565
    %v663 = vunpack.c.h.b16 %v565
    %v664 = vunpack.c.l.b16 %v566
    %v665 = vunpack.c.h.b16 %v566
    %v666 = vunpack.c.l.b16 %v567
    %v667 = vunpack.c.h.b16 %v567
    %v668 = vunpack.c.l.b16 %v568
    %v669 = vunpack.c.h.b16 %v568
    %v670 = vunpack.c.l.b16 %v569
    %v671 = vunpack.c.h.b16 %v569
    %v672 = vunpack.c.l.b16 %v570
    %v673 = vunpack.c.h.b16 %v570
    %v674 = vunpack.c.l.b16 %v571
    %v675 = vunpack.c.h.b16 %v571
    %v676 = vunpack.c.l.b16 %v572
    %v677 = vunpack.c.h.b16 %v572
    %v678 = vunpack.c.l.b16 %v573
    %v679 = vunpack.c.h.b16 %v573
    %v680 = vunpack.c.l.b16 %v574
    %v681 = vunpack.c.h.b16 %v574
    %v682 = vunpack.c.l.b16 %v575
    %v683 = vunpack.c.h.b16 %v575
    %v684 = vpack.c.b16 %v622, %v620
    %v685 = vpack.c.b16 %v623, %v621
    %v686 = vpack.c.b16 %v626, %v624
    %v687 = vpack.c.b16 %v627, %v625
    %v688 = vpack.c.b16 %v630, %v628
    %v689 = vpack.c.b16 %v631, %v629
    %v690 = vpack.c.b16 %v634, %v632
    %v691 = vpack.c.b16 %v635, %v633
    %v692 = vpack.c.b16 %v638, %v636
    %v693 = vpack.c.b16 %v639, %v637
    %v694 = vpack.c.b16 %v642, %v640
    %v695 = vpack.c.b16 %v643, %v641
    %v696 = vpack.c.b16 %v646, %v644
    %v697 = vpack.c.b16 %v647, %v645
    %v698 = vpack.c.b16 %v650, %v648
    %v699 = vpack.c.b16 %v651, %v649
    %v700 = vpack.c.b16 %v654, %v652
    %v701 = vpack.c.b16 %v655, %v653
    %v702 = vpack.c.b16 %v658, %v656
    %v703 = vpack.c.b16 %v659, %v657
    %v704 = vpack.c.b16 %v662, %v660
    %v705 = vpack.c.b16 %v663, %v661
    %v706 = vpack.c.b16 %v666, %v664
    %v707 = vpack.c.b16 %v667, %v665
    %v708 = vpack.c.b16 %v670, %v668
    %v709 = vpack.c.b16 %v671, %v669
    %v710 = vpack.c.b16 %v674, %v672
    %v711 = vpack.c.b16 %v675, %v673
    %v712 = vpack.c.b16 %v678, %v676
    %v713 = vpack.c.b16 %v679, %v677
    %v714 = vpack.c.b16 %v682, %v680
    %v715 = vpack.c.b16 %v683, %v681
    %748 = vmatprep.subr.bf16.mxu0 %v685
    %749 = vmatpush1.bf16.msra.mxu0 %v684
    %750 = vmatprep.subr.bf16.mxu0 %v687
    %751 = vmatpush1.bf16.msra.mxu0 %v686
    %752 = vmatprep.subr.bf16.mxu0 %v689
    %753 = vmatpush1.bf16.msra.mxu0 %v688
    %754 = vmatprep.subr.bf16.mxu0 %v691
    %755 = vmatpush1.bf16.msra.mxu0 %v690
    %756 = vmatprep.subr.bf16.mxu0 %v693
    %757 = vmatpush1.bf16.msra.mxu0 %v692
    %758 = vmatprep.subr.bf16.mxu0 %v695
    %759 = vmatpush1.bf16.msra.mxu0 %v694
    %760 = vmatprep.subr.bf16.mxu0 %v697
    %761 = vmatpush1.bf16.msra.mxu0 %v696
    %762 = vmatprep.subr.bf16.mxu0 %v699
    %763 = vmatpush1.bf16.msra.mxu0 %v698
    %764 = vmatprep.subr.bf16.mxu0 %v701
    %765 = vmatpush1.bf16.msra.mxu0 %v700
    %766 = vmatprep.subr.bf16.mxu0 %v703
    %767 = vmatpush1.bf16.msra.mxu0 %v702
    %768 = vmatprep.subr.bf16.mxu0 %v705
    %769 = vmatpush1.bf16.msra.mxu0 %v704
    %770 = vmatprep.subr.bf16.mxu0 %v707
    %771 = vmatpush1.bf16.msra.mxu0 %v706
    %772 = vmatprep.subr.bf16.mxu0 %v709
    %773 = vmatpush1.bf16.msra.mxu0 %v708
    %774 = vmatprep.subr.bf16.mxu0 %v711
    %775 = vmatpush1.bf16.msra.mxu0 %v710
    %776 = vmatprep.subr.bf16.mxu0 %v713
    %777 = vmatpush1.bf16.msra.mxu0 %v712
    %778 = vmatprep.subr.bf16.mxu0 %v715
    %779 = vmatpush1.bf16.msra.mxu0 %v714
    %780 = vmatprep.mubr.bf16.mxu0 %v529
    %781 = vmatmul.mubr.bf16.gmra.mrb[0].mxu0 %v528
    %v782 = vpop.f32.mrb[0].mxu0
    %v783 = vadd.f32 %v581, %v782
    %v784 = vpop.f32.mrb[0].mxu0
    %v785 = vadd.f32 %v585, %v784
    %v786 = vpop.f32.mrb[0].mxu0
    %v787 = vadd.f32 %v581, %v786
    %v788 = vpop.f32.mrb[0].mxu0
    %v789 = vadd.f32 %v585, %v788
    %790 = vmatprep.mubr.bf16.mxu0 %v531
    %791 = vmatmul.mubr.bf16.gmra.mrb[0].mxu0 %v530
    %v792 = vpop.f32.mrb[0].mxu0
    %v793 = vadd.f32 %v581, %v792
    %v794 = vpop.f32.mrb[0].mxu0
    %v795 = vadd.f32 %v585, %v794
    %v796 = vpop.f32.mrb[0].mxu0
    %v797 = vadd.f32 %v581, %v796
    %v798 = vpop.f32.mrb[0].mxu0
    %v799 = vadd.f32 %v585, %v798
    %800 = vmatprep.mubr.bf16.mxu0 %v533
    %801 = vmatmul.mubr.bf16.gmra.mrb[0].mxu0 %v532
    %v802 = vpop.f32.mrb[0].mxu0
    %v803 = vadd.f32 %v581, %v802
    %v804 = vpop.f32.mrb[0].mxu0
    %v805 = vadd.f32 %v585, %v804
    %v806 = vpop.f32.mrb[0].mxu0
    %v807 = vadd.f32 %v581, %v806
    %v808 = vpop.f32.mrb[0].mxu0
    %v809 = vadd.f32 %v585, %v808
    %810 = vmatprep.mubr.bf16.mxu0 %v535
    %811 = vmatmul.mubr.bf16.gmra.mrb[0].mxu0 %v534
    %v812 = vpop.f32.mrb[0].mxu0
    %v813 = vadd.f32 %v581, %v812
    %v814 = vpop.f32.mrb[0].mxu0
    %v815 = vadd.f32 %v585, %v814
    %v816 = vpop.f32.mrb[0].mxu0
    %v817 = vadd.f32 %v581, %v816
    %v818 = vpop.f32.mrb[0].mxu0
    %v819 = vadd.f32 %v585, %v818
    %820 = vmatprep.mubr.bf16.mxu0 %v537
    %821 = vmatmul.mubr.bf16.gmra.mrb[0].mxu0 %v536
    %v822 = vpop.f32.mrb[0].mxu0
    %v823 = vadd.f32 %v581, %v822
    %v824 = vpop.f32.mrb[0].mxu0
    %v825 = vadd.f32 %v585, %v824
    %v826 = vpop.f32.mrb[0].mxu0
    %v827 = vadd.f32 %v581, %v826
    %v828 = vpop.f32.mrb[0].mxu0
    %v829 = vadd.f32 %v585, %v828
    %830 = vmatprep.mubr.bf16.mxu0 %v539
    %831 = vmatmul.mubr.bf16.gmra.mrb[0].mxu0 %v538
    %v832 = vpop.f32.mrb[0].mxu0
    %v833 = vadd.f32 %v581, %v832
    %v834 = vpop.f32.mrb[0].mxu0
    %v835 = vadd.f32 %v585, %v834
    %v836 = vpop.f32.mrb[0].mxu0
    %v837 = vadd.f32 %v581, %v836
    %v838 = vpop.f32.mrb[0].mxu0
    %v839 = vadd.f32 %v585, %v838
    %840 = vmatprep.mubr.bf16.mxu0 %v541
    %841 = vmatmul.mubr.bf16.gmra.mrb[0].mxu0 %v540
    %v842 = vpop.f32.mrb[0].mxu0
    %v843 = vadd.f32 %v581, %v842
    %v844 = vpop.f32.mrb[0].mxu0
    %v845 = vadd.f32 %v585, %v844
    %v846 = vpop.f32.mrb[0].mxu0
    %v847 = vadd.f32 %v581, %v846
    %v848 = vpop.f32.mrb[0].mxu0
    %v849 = vadd.f32 %v585, %v848
    %850 = vmatprep.mubr.bf16.mxu0 %v543
    %851 = vmatmul.mubr.bf16.gmra.mrb[0].mxu0 %v542
    %v852 = vpop.f32.mrb[0].mxu0
    %v853 = vadd.f32 %v581, %v852
    %v854 = vpop.f32.mrb[0].mxu0
    %v855 = vadd.f32 %v585, %v854
    %v856 = vpop.f32.mrb[0].mxu0
    %v857 = vadd.f32 %v581, %v856
    %v858 = vpop.f32.mrb[0].mxu0
    %v859 = vadd.f32 %v585, %v858
    %860 = vdwg.mxu0
    %v861 = vmax.f32 %v783, 0.0
    %v862 = vmax.f32 %v785, 0.0
    %v863 = vmax.f32 %v787, 0.0
    %v864 = vmax.f32 %v789, 0.0
    %v865 = vmax.f32 %v793, 0.0
    %v866 = vmax.f32 %v795, 0.0
    %v867 = vmax.f32 %v797, 0.0
    %v868 = vmax.f32 %v799, 0.0
    %v869 = vmax.f32 %v803, 0.0
    %v870 = vmax.f32 %v805, 0.0
    %v871 = vmax.f32 %v807, 0.0
    %v872 = vmax.f32 %v809, 0.0
    %v873 = vmax.f32 %v813, 0.0
    %v874 = vmax.f32 %v815, 0.0
    %v875 = vmax.f32 %v817, 0.0
    %v876 = vmax.f32 %v819, 0.0
    %v877 = vmax.f32 %v823, 0.0
    %v878 = vmax.f32 %v825, 0.0
    %v879 = vmax.f32 %v827, 0.0
    %v880 = vmax.f32 %v829, 0.0
    %v881 = vmax.f32 %v833, 0.0
    %v882 = vmax.f32 %v835, 0.0
    %v883 = vmax.f32 %v837, 0.0
    %v884 = vmax.f32 %v839, 0.0
    %v885 = vmax.f32 %v843, 0.0
    %v886 = vmax.f32 %v845, 0.0
    %v887 = vmax.f32 %v847, 0.0
    %v888 = vmax.f32 %v849, 0.0
    %v889 = vmax.f32 %v853, 0.0
    %v890 = vmax.f32 %v855, 0.0
    %v891 = vmax.f32 %v857, 0.0
    %v892 = vmax.f32 %v859, 0.0
    %v893 = vpack.c.bf16 %v863, %v861
    %v894 = vpack.c.bf16 %v864, %v862
    %v895 = vpack.c.bf16 %v867, %v865
    %v896 = vpack.c.bf16 %v868, %v866
    %v897 = vpack.c.bf16 %v871, %v869
    %v898 = vpack.c.bf16 %v872, %v870
    %v899 = vpack.c.bf16 %v875, %v873
    %v900 = vpack.c.bf16 %v876, %v874
    %v901 = vpack.c.bf16 %v879, %v877
    %v902 = vpack.c.bf16 %v880, %v878
    %v903 = vpack.c.bf16 %v883, %v881
    %v904 = vpack.c.bf16 %v884, %v882
    %v905 = vpack.c.bf16 %v887, %v885
    %v906 = vpack.c.bf16 %v888, %v886
    %v907 = vpack.c.bf16 %v891, %v889
    %v908 = vpack.c.bf16 %v892, %v890
    %v909 = vld [vmem:[#allocation8] sm:$0xf]
    %v910 = vld [vmem:[#allocation8 + $0x4] sm:$0xf]
    %v911 = vld [vmem:[#allocation8 + $0x8] sm:$0xf]
    %v912 = vld [vmem:[#allocation8 + $0xc] sm:$0xf]
    %v913 = vld [vmem:[#allocation8 + $0x10] sm:$0xf]
    %v914 = vld [vmem:[#allocation8 + $0x14] sm:$0xf]
    %v915 = vld [vmem:[#allocation8 + $0x18] sm:$0xf]
    %v916 = vld [vmem:[#allocation8 + $0x1c] sm:$0xf]
    %v917 = vld [vmem:[#allocation8 + $0x20] sm:$0xf]
    %v918 = vld [vmem:[#allocation8 + $0x24] sm:$0xf]
    %v919 = vld [vmem:[#allocation8 + $0x28] sm:$0xf]
    %v920 = vld [vmem:[#allocation8 + $0x2c] sm:$0xf]
    %v921 = vld [vmem:[#allocation8 + $0x30] sm:$0xf]
    %v922 = vld [vmem:[#allocation8 + $0x34] sm:$0xf]
    %v923 = vld [vmem:[#allocation8 + $0x38] sm:$0xf]
    %v924 = vld [vmem:[#allocation8 + $0x3c] sm:$0xf]
    %v925 = vld [vmem:[#allocation8 + $0x40] sm:$0xf]
    %v926 = vld [vmem:[#allocation8 + $0x44] sm:$0xf]
    %v927 = vld [vmem:[#allocation8 + $0x48] sm:$0xf]
    %v928 = vld [vmem:[#allocation8 + $0x4c] sm:$0xf]
    %v929 = vld [vmem:[#allocation8 + $0x50] sm:$0xf]
    %v930 = vld [vmem:[#allocation8 + $0x54] sm:$0xf]
    %v931 = vld [vmem:[#allocation8 + $0x58] sm:$0xf]
    %v932 = vld [vmem:[#allocation8 + $0x5c] sm:$0xf]
    %v933 = vld [vmem:[#allocation8 + $0x60] sm:$0xf]
    %v934 = vld [vmem:[#allocation8 + $0x64] sm:$0xf]
    %v935 = vld [vmem:[#allocation8 + $0x68] sm:$0xf]
    %v936 = vld [vmem:[#allocation8 + $0x6c] sm:$0xf]
    %v937 = vld [vmem:[#allocation8 + $0x70] sm:$0xf]
    %v938 = vld [vmem:[#allocation8 + $0x74] sm:$0xf]
    %v939 = vld [vmem:[#allocation8 + $0x78] sm:$0xf]
    %v940 = vld [vmem:[#allocation8 + $0x7c] sm:$0xf]
    %v941 = vld [vmem:[%s6] sm:$0x1]
    %v943 = vlaneseq
    %v944 = vshrl.u32 %v943, 7
    %v945 = vsub.s32 0, %v944
    %v946 = vrot.slane %v941, %v945
    %v980 = vunpack.c.l.b16 %v909
    %v981 = vunpack.c.l.b16 %v910
    %v982 = vunpack.c.l.b16 %v911
    %v983 = vunpack.c.l.b16 %v912
    %v984 = vunpack.c.l.b16 %v913
    %v985 = vunpack.c.l.b16 %v914
    %v986 = vunpack.c.l.b16 %v915
    %v987 = vunpack.c.l.b16 %v916
    %v988 = vunpack.c.l.b16 %v917
    %v989 = vunpack.c.l.b16 %v918
    %v990 = vunpack.c.l.b16 %v919
    %v991 = vunpack.c.l.b16 %v920
    %v992 = vunpack.c.l.b16 %v921
    %v993 = vunpack.c.l.b16 %v922
    %v994 = vunpack.c.l.b16 %v923
    %v995 = vunpack.c.l.b16 %v924
    %v996 = vunpack.c.l.b16 %v925
    %v997 = vunpack.c.l.b16 %v926
    %v998 = vunpack.c.l.b16 %v927
    %v999 = vunpack.c.l.b16 %v928
    %v1000 = vunpack.c.l.b16 %v929
    %v1001 = vunpack.c.l.b16 %v930
    %v1002 = vunpack.c.l.b16 %v931
    %v1003 = vunpack.c.l.b16 %v932
    %v1004 = vunpack.c.l.b16 %v933
    %v1005 = vunpack.c.l.b16 %v934
    %v1006 = vunpack.c.l.b16 %v935
    %v1007 = vunpack.c.l.b16 %v936
    %v1008 = vunpack.c.l.b16 %v937
    %v1009 = vunpack.c.l.b16 %v938
    %v1010 = vunpack.c.l.b16 %v939
    %v1011 = vunpack.c.l.b16 %v940
    %v1012 = vpack.c.b16 %v981, %v980
    %v1013 = vpack.c.b16 %v983, %v982
    %v1014 = vpack.c.b16 %v985, %v984
    %v1015 = vpack.c.b16 %v987, %v986
    %v1016 = vpack.c.b16 %v989, %v988
    %v1017 = vpack.c.b16 %v991, %v990
    %v1018 = vpack.c.b16 %v993, %v992
    %v1019 = vpack.c.b16 %v995, %v994
    %v1020 = vpack.c.b16 %v997, %v996
    %v1021 = vpack.c.b16 %v999, %v998
    %v1022 = vpack.c.b16 %v1001, %v1000
    %v1023 = vpack.c.b16 %v1003, %v1002
    %v1024 = vpack.c.b16 %v1005, %v1004
    %v1025 = vpack.c.b16 %v1007, %v1006
    %v1026 = vpack.c.b16 %v1009, %v1008
    %v1027 = vpack.c.b16 %v1011, %v1010
    %1044 = vmatprep.subr.bf16.mxu0 0
    %1045 = vmatpush1.bf16.msra.mxu0 %v1012
    %1046 = vmatprep.subr.bf16.mxu0 0
    %1047 = vmatpush1.bf16.msra.mxu0 %v1013
    %1048 = vmatprep.subr.bf16.mxu0 0
    %1049 = vmatpush1.bf16.msra.mxu0 %v1014
    %1050 = vmatprep.subr.bf16.mxu0 0
    %1051 = vmatpush1.bf16.msra.mxu0 %v1015
    %1052 = vmatprep.subr.bf16.mxu0 0
    %1053 = vmatpush1.bf16.msra.mxu0 %v1016
    %1054 = vmatprep.subr.bf16.mxu0 0
    %1055 = vmatpush1.bf16.msra.mxu0 %v1017
    %1056 = vmatprep.subr.bf16.mxu0 0
    %1057 = vmatpush1.bf16.msra.mxu0 %v1018
    %1058 = vmatprep.subr.bf16.mxu0 0
    %1059 = vmatpush1.bf16.msra.mxu0 %v1019
    %1060 = vmatprep.subr.bf16.mxu0 0
    %1061 = vmatpush1.bf16.msra.mxu0 %v1020
    %1062 = vmatprep.subr.bf16.mxu0 0
    %1063 = vmatpush1.bf16.msra.mxu0 %v1021
    %1064 = vmatprep.subr.bf16.mxu0 0
    %1065 = vmatpush1.bf16.msra.mxu0 %v1022
    %1066 = vmatprep.subr.bf16.mxu0 0
    %1067 = vmatpush1.bf16.msra.mxu0 %v1023
    %1068 = vmatprep.subr.bf16.mxu0 0
    %1069 = vmatpush1.bf16.msra.mxu0 %v1024
    %1070 = vmatprep.subr.bf16.mxu0 0
    %1071 = vmatpush1.bf16.msra.mxu0 %v1025
    %1072 = vmatprep.subr.bf16.mxu0 0
    %1073 = vmatpush1.bf16.msra.mxu0 %v1026
    %1074 = vmatprep.subr.bf16.mxu0 0
    %1075 = vmatpush1.bf16.msra.mxu0 %v1027
    %1076 = vmatprep.mubr.bf16.mxu0 %v894
    %1077 = vmatmul.mubr.bf16.gmra.mrb[0].mxu0 %v893
    %v1078 = vpop.f32.mrb[0].mxu0
    %v1079 = vadd.f32 %v946, %v1078
    %v1080 = vpop.f32.mrb[0].mxu0
    %v1081 = vpop.f32.mrb[0].mxu0
    %v1082 = vadd.f32 %v946, %v1081
    %v1083 = vpop.f32.mrb[0].mxu0
    %1084 = vmatprep.mubr.bf16.mxu0 %v896
    %1085 = vmatmul.mubr.bf16.gmra.mrb[0].mxu0 %v895
    %v1086 = vpop.f32.mrb[0].mxu0
    %v1087 = vadd.f32 %v946, %v1086
    %v1088 = vpop.f32.mrb[0].mxu0
    %v1089 = vpop.f32.mrb[0].mxu0
    %v1090 = vadd.f32 %v946, %v1089
    %v1091 = vpop.f32.mrb[0].mxu0
    %1092 = vmatprep.mubr.bf16.mxu0 %v898
    %1093 = vmatmul.mubr.bf16.gmra.mrb[0].mxu0 %v897
    %v1094 = vpop.f32.mrb[0].mxu0
    %v1095 = vadd.f32 %v946, %v1094
    %v1096 = vpop.f32.mrb[0].mxu0
    %v1097 = vpop.f32.mrb[0].mxu0
    %v1098 = vadd.f32 %v946, %v1097
    %v1099 = vpop.f32.mrb[0].mxu0
    %1100 = vmatprep.mubr.bf16.mxu0 %v900
    %1101 = vmatmul.mubr.bf16.gmra.mrb[0].mxu0 %v899
    %v1102 = vpop.f32.mrb[0].mxu0
    %v1103 = vadd.f32 %v946, %v1102
    %v1104 = vpop.f32.mrb[0].mxu0
    %v1105 = vpop.f32.mrb[0].mxu0
    %v1106 = vadd.f32 %v946, %v1105
    %v1107 = vpop.f32.mrb[0].mxu0
    %1108 = vmatprep.mubr.bf16.mxu0 %v902
    %1109 = vmatmul.mubr.bf16.gmra.mrb[0].mxu0 %v901
    %v1110 = vpop.f32.mrb[0].mxu0
    %v1111 = vadd.f32 %v946, %v1110
    %v1112 = vpop.f32.mrb[0].mxu0
    %v1113 = vpop.f32.mrb[0].mxu0
    %v1114 = vadd.f32 %v946, %v1113
    %v1115 = vpop.f32.mrb[0].mxu0
    %1116 = vmatprep.mubr.bf16.mxu0 %v904
    %1117 = vmatmul.mubr.bf16.gmra.mrb[0].mxu0 %v903
    %v1118 = vpop.f32.mrb[0].mxu0
    %v1119 = vadd.f32 %v946, %v1118
    %v1120 = vpop.f32.mrb[0].mxu0
    %v1121 = vpop.f32.mrb[0].mxu0
    %v1122 = vadd.f32 %v946, %v1121
    %v1123 = vpop.f32.mrb[0].mxu0
    %1124 = vmatprep.mubr.bf16.mxu0 %v906
    %1125 = vmatmul.mubr.bf16.gmra.mrb[0].mxu0 %v905
    %v1126 = vpop.f32.mrb[0].mxu0
    %v1127 = vadd.f32 %v946, %v1126
    %v1128 = vpop.f32.mrb[0].mxu0
    %v1129 = vpop.f32.mrb[0].mxu0
    %v1130 = vadd.f32 %v946, %v1129
    %v1131 = vpop.f32.mrb[0].mxu0
    %1132 = vmatprep.mubr.bf16.mxu0 %v908
    %1133 = vmatmul.mubr.bf16.gmra.mrb[0].mxu0 %v907
    %v1134 = vpop.f32.mrb[0].mxu0
    %v1135 = vadd.f32 %v946, %v1134
    %v1136 = vpop.f32.mrb[0].mxu0
    %v1137 = vpop.f32.mrb[0].mxu0
    %v1138 = vadd.f32 %v946, %v1137
    %v1139 = vpop.f32.mrb[0].mxu0
    %1140 = vdwg.mxu0
    %1141 = vst [vmem:[#allocation10] sm:$0xff] %v1079
    %1142 = vst [vmem:[#allocation10 + $0x8] sm:$0xff] %v1082
    %1143 = vst [vmem:[#allocation10 + $0x10] sm:$0xff] %v1087
    %1144 = vst [vmem:[#allocation10 + $0x18] sm:$0xff] %v1090
    %1145 = vst [vmem:[#allocation10 + $0x20] sm:$0xff] %v1095
    %1146 = vst [vmem:[#allocation10 + $0x28] sm:$0xff] %v1098
    %1147 = vst [vmem:[#allocation10 + $0x30] sm:$0xff] %v1103
    %1148 = vst [vmem:[#allocation10 + $0x38] sm:$0xff] %v1106
    %1149 = vst [vmem:[#allocation10 + $0x40] sm:$0xff] %v1111
    %1150 = vst [vmem:[#allocation10 + $0x48] sm:$0xff] %v1114
    %1151 = vst [vmem:[#allocation10 + $0x50] sm:$0xff] %v1119
    %1152 = vst [vmem:[#allocation10 + $0x58] sm:$0xff] %v1122
    %1153 = vst [vmem:[#allocation10 + $0x60] sm:$0xff] %v1127
    %1154 = vst [vmem:[#allocation10 + $0x68] sm:$0xff] %v1130
    %1155 = vst [vmem:[#allocation10 + $0x70] sm:$0xff] %v1135
    %1156 = vst [vmem:[#allocation10 + $0x78] sm:$0xff] %v1138
    // Predicated region
    $region46: #{tpu_custom_call.1} parent=1 // pred_check
      _
    $region47: #{tpu_custom_call.1} parent=1 // pred_check_branch
      %1158 = sbr.rel (0) target = $region49
    $region48: #{tpu_custom_call.1} parent=1 // pred_region
      %s1160 = ssub.s32 2048, 2048
      %1161 = vsyncadd [#allocation4], %s1160
      %s1162 = sshll.u32 [#allocation10], 4
      %s1163 = int_to_ptr.vmem [resolvable:$true] %s1162
      %1168 = dma.vmem_to_hbm [thread:$0]  %s1163, 2048, %s7, [#allocation4], 128, 128, 8
    $region49: #{tpu_custom_call.1} parent=1 // pred_fallthru
      _
    // Predicated region
    $region50: #{tpu_custom_call.1} parent=1 // pred_check
      _
    $region51: #{tpu_custom_call.1} parent=1 // pred_check_branch
      %1170 = sbr.rel (0) target = $region53
    $region52: #{tpu_custom_call.1} parent=1 // pred_region
      %1171 = dma.done [#allocation4], 2048
    $region53: #{tpu_custom_call.1} parent=1 // pred_fallthru
      _
    %1172 = vsyncpa [#allocation3], 1
    %1173 = vsyncpa [#allocation6], 1
    %1174 = vsyncpa [#allocation9], 1
    %1175 = vsyncpa [#allocation4], 1

</llo_original>
